<compile_context>
chip_gen: v7x
topology: tpu7x:2x2x1
jax: 0.10.0
libtpu: 0.0.40
codegen_flags: <defaults>
</compile_context>

<pallas_src>
import jax
import jax.numpy as jnp
from jax.experimental import pallas as pl
from jax.experimental.pallas import tpu as pltpu


def _awl_kernel(loss_ref, p_ref, out_ref):
    # loss_ref: (1, num) f32 VMEM — per-task losses, lane-aligned on sublane 0.
    # p_ref   : (1, num) f32 VMEM — uncertainty params, lane-aligned on sublane 0.
    # out_ref : (1, 1)   f32 SMEM — scalar result.
    num = loss_ref.shape[1]

    losses = loss_ref[...]                       # (1, num)
    p = p_ref[...]                               # (1, num)
    p2 = p * p

    # EUP approximate reciprocal + one Newton step (~f32-exact, off the VPU
    # critical path).
    inv = pl.reciprocal(p2, approx=True)
    inv = inv * (2.0 - p2 * inv)

    # Exact semantics of: 0.5 / params[i]**2 * loss + log(1 + params[i]**2)
    term = (0.5 * losses) * inv + jnp.log(1.0 + p2)

    # Guard the reduction against NaN/Inf from uninitialized padded lanes.
    lane = jax.lax.broadcasted_iota(jnp.int32, term.shape, 1)
    term = jnp.where(lane < num, term, 0.0)

    out_ref[0, 0] = jnp.sum(term)


@jax.jit
def automatic_weighted_loss(losses, params):
    """losses: (num,) f32, params: (num,) f32 -> scalar f32 (Pallas kernel path)."""
    losses = losses.astype(jnp.float32).reshape(1, -1)   # (1, num)
    params = params.astype(jnp.float32).reshape(1, -1)   # (1, num)
    num = losses.shape[1]

    out = pl.pallas_call(
        _awl_kernel,
        out_shape=jax.ShapeDtypeStruct((1, 1), jnp.float32),
        # Full-array blocks; Mosaic lane-pads the tiny loads. No grid, no
        # pipelining: one vreg of work, launch-overhead bound by design.
        in_specs=[
            pl.BlockSpec(memory_space=pltpu.VMEM),
            pl.BlockSpec(memory_space=pltpu.VMEM),
        ],
        # Scalar output in SMEM: no padded VMEM tile / writeback DMA.
        out_specs=pl.BlockSpec(memory_space=pltpu.SMEM),
        cost_estimate=pl.CostEstimate(
            flops=6 * num, transcendentals=2 * num, bytes_accessed=8 * num + 4),
    )(losses, params)
    return out[0, 0]


def automatic_weighted_loss_fused(losses, params):
    """Plain-jnp path: preferred inside a larger jit (fuses with loss producers,
    differentiable w.r.t. params)."""
    p2 = params.astype(jnp.float32) ** 2
    return jnp.sum(0.5 / p2 * losses.astype(jnp.float32) + jnp.log(1.0 + p2))


class AutomaticWeightedLossJAX:
    """Mirror of the PyTorch module; params initialized to ones (as in __init__)."""

    def __init__(self, num=2):
        self.num = num
        self.params = jnp.ones((num,), jnp.float32)  # deterministic init

        # Whole call (scalar gathering + kernel) under one jit -> single dispatch.
        def _call(params, *losses):
            losses_vec = jnp.stack(
                [jnp.asarray(l, jnp.float32).reshape(()) for l in losses])
            return automatic_weighted_loss(losses_vec, params)

        self._call = jax.jit(_call)

    def __call__(self, *losses):
        return self._call(self.params, *losses)


if __name__ == "__main__":
    key = jax.random.PRNGKey(0)
    num = 3
    # Synthetic scalar per-task losses (e.g. outputs of 3 different heads).
    loss_vals = jax.random.uniform(key, (num,), jnp.float32, minval=0.1, maxval=3.0)

    awl = AutomaticWeightedLossJAX(num=num)
    out = awl(*[loss_vals[i] for i in range(num)])
    out = jax.block_until_ready(out)

    # Pure-JAX reference (matches the PyTorch forward exactly).
    p = awl.params
    ref = jnp.sum(0.5 / (p ** 2) * loss_vals + jnp.log(1.0 + p ** 2))
    # approx-reciprocal + one Newton step is ~f32-accurate; 1e-5 gives headroom.
    assert jnp.allclose(out, ref, rtol=1e-5, atol=1e-5), (out, ref)

    print("KERNEL_OK")
</pallas_src>

<mosaic_0001>
module attributes {stable_mosaic.version = 11 : i64} {
  func.func @_awl_kernel(%arg0: memref<1x3xf32, #tpu.memory_space<vmem>>, %arg1: memref<1x3xf32, #tpu.memory_space<vmem>>, %arg2: memref<1x1xf32, #tpu.memory_space<smem>>) attributes {dimension_semantics = [], scalar_prefetch = 0 : i64, scratch_operands = 0 : i64, tpu.core_type = #tpu.core_type<tc>} {
    %c0 = arith.constant 0 : index
    %c0_0 = arith.constant 0 : index
    %0 = vector.load %arg0[%c0, %c0_0] : memref<1x3xf32, #tpu.memory_space<vmem>>, vector<1x3xf32>
    %c0_1 = arith.constant 0 : index
    %c0_2 = arith.constant 0 : index
    %1 = vector.load %arg1[%c0_1, %c0_2] : memref<1x3xf32, #tpu.memory_space<vmem>>, vector<1x3xf32>
    %2 = arith.mulf %1, %1 : vector<1x3xf32>
    %3 = tpu.reciprocal %2 {approx = true} : vector<1x3xf32> -> vector<1x3xf32>
    %4 = arith.mulf %2, %3 : vector<1x3xf32>
    %cst = arith.constant 2.000000e+00 : f32
    %5 = vector.broadcast %cst : f32 to vector<1x3xf32>
    %6 = arith.subf %5, %4 : vector<1x3xf32>
    %7 = arith.mulf %3, %6 : vector<1x3xf32>
    %cst_3 = arith.constant 5.000000e-01 : f32
    %8 = vector.broadcast %cst_3 : f32 to vector<1x3xf32>
    %9 = arith.mulf %8, %0 : vector<1x3xf32>
    %10 = arith.mulf %9, %7 : vector<1x3xf32>
    %cst_4 = arith.constant 1.000000e+00 : f32
    %11 = vector.broadcast %cst_4 : f32 to vector<1x3xf32>
    %12 = arith.addf %11, %2 : vector<1x3xf32>
    %13 = math.log %12 : vector<1x3xf32>
    %14 = arith.addf %10, %13 : vector<1x3xf32>
    %15 = tpu.iota {dimensions = array<i32: 1>} : vector<1x3xi32>
    %c3_i32 = arith.constant 3 : i32
    %16 = vector.broadcast %c3_i32 : i32 to vector<1x3xi32>
    %17 = arith.cmpi slt, %15, %16 : vector<1x3xi32>
    %cst_5 = arith.constant 0.000000e+00 : f32
    %18 = vector.broadcast %cst_5 : f32 to vector<1x3xf32>
    %19 = arith.select %17, %14, %18 : vector<1x3xi1>, vector<1x3xf32>
    %20 = vector.shape_cast %19 : vector<1x3xf32> to vector<1x1x3xf32>
    %cst_6 = arith.constant dense<0.000000e+00> : vector<1xf32>
    %21 = vector.multi_reduction <add>, %20, %cst_6 [1, 2] : vector<1x1x3xf32> to vector<1xf32>
    %22 = vector.shape_cast %21 : vector<1xf32> to vector<1x1x1xf32>
    %23 = vector.extract %22[0, 0, 0] : f32 from vector<1x1x1xf32>
    %c0_7 = arith.constant 0 : index
    %c0_8 = arith.constant 0 : index
    %24 = memref.load %arg2[%c0_7, %c0_8] : memref<1x1xf32, #tpu.memory_space<smem>>
    memref.store %23, %arg2[%c0_7, %c0_8] : memref<1x1xf32, #tpu.memory_space<smem>>
    return
  }
}

</mosaic_0001>

<llo_original>
// kernel: automatic_weighted_loss.1
$region0: #{automatic_weighted_loss.1}
  #allocation0 [shape = 'u32[]', space=smem, size = 0x4, offset = 0x4, fixed_abs, tag = 'smem constant byte address 0x4 - core index']
  #allocation1 [shape = 'u32[144,128]{1,0:T(1,128)}', space=vmem, size = 0x12000, scoped, tag = 'internal scratch']
  %s0 = inlined_call_operand.vmem [shape: f32[1,3], index: 0, kind: input, shape index: {}]
  %s1 = inlined_call_operand.vmem [shape: f32[1,3], index: 1, kind: input, shape index: {}]
  %s2 = inlined_call_operand.hbm [shape: f32[1,1], index: 2, kind: output, shape index: {}]
  %s3 = sld [smem:[#allocation0]]
  $region18: #{automatic_weighted_loss.1} parent=0
    _
  %s5 = ssub.s32 1, %s3
  %s6 = scalar_select 0, %s5, %s3
  $region1: #{automatic_weighted_loss.1} parent=0
    #allocation2 [shape = 'u8[512]{0}', space=smem, size = 0x200, scoped, tag = 'output window, operand 0, single buffered']
    #allocation3 [shape = 's32[1]{0}', space=sflag, size = 0x4, scoped, tag = 'scoped memory for automatic_weighted_loss.1']
    %7 = vsyncpa [#allocation3], 0
    // Predicated region
    $region2: #{automatic_weighted_loss.1} parent=1 // pred_check
      _
    $region3: #{automatic_weighted_loss.1} parent=1 // pred_check_branch
      %9 = sbr.rel (0) target = $region5
    $region4: #{automatic_weighted_loss.1} parent=1 // pred_region
      _
    $region5: #{automatic_weighted_loss.1} parent=1 // pred_fallthru
      _
    // Predicated region
    $region6: #{automatic_weighted_loss.1} parent=1 // pred_check
      _
    $region7: #{automatic_weighted_loss.1} parent=1 // pred_check_branch
      %11 = sbr.rel (0) target = $region9
    $region8: #{automatic_weighted_loss.1} parent=1 // pred_region
      _
    $region9: #{automatic_weighted_loss.1} parent=1 // pred_fallthru
      _
    %v12 = vld [vmem:[%s0] sm:$0x1]
    %v13 = vld [vmem:[%s1] sm:$0x1]
    %v14 = vmul.f32 %v13, %v13
    %v15 = vrcp.pop %v14
    %v16 = vmul.f32 %v14, %v15
    %v17 = vsub.f32 2.0, %v16
    %v18 = vmul.f32 %v15, %v17
    %v19 = vmul.f32 %v12, 0.5
    %v20 = vmul.f32 %v19, %v18
    %v21 = vadd.f32 %v14, 1.0
    %v22 = vlog2.pop %v21
    %v23 = vmul.f32 %v22, 0.6931472
    %v24 = vadd.f32 %v20, %v23
    %v25 = vlaneseq
    %v26 = vand.u32 %v25, 127
    %vm27 = vcmp.lt.s32.totalorder %v26, 3
    %v28 = vsel %vm27, %v24, 0.0
    %vm29 = vcmask 16384
    %v30 = vsel %vm29, %v28, 0.0
    %31 = vadd.xlane.f32.xlu0 %v30
    %v32 = vpop.xlane.xlu0 %31
    %v33 = vrot.slane %v32, 4
    %v34 = vadd.f32 %v32, %v33
    %v35 = vrot.slane %v34, 2
    %v36 = vadd.f32 %v34, %v35
    %v37 = vrot.slane %v36, 1
    %v38 = vadd.f32 %v36, %v37
    %s39 = vtos %v38
    %s40 = scalar_lea.smem [#allocation2], 0
    %41 = sst [smem:[%s40]] %s39
    // Predicated region
    $region10: #{automatic_weighted_loss.1} parent=1 // pred_check
      _
    $region11: #{automatic_weighted_loss.1} parent=1 // pred_check_branch
      %43 = sbr.rel (0) target = $region13
    $region12: #{automatic_weighted_loss.1} parent=1 // pred_region
      %s45 = ssub.s32 16, 16
      %46 = vsyncadd [#allocation3], %s45
      %49 = dma.smem_to_hbm [#allocation2], 16, %s2, [#allocation3]
    $region13: #{automatic_weighted_loss.1} parent=1 // pred_fallthru
      _
    // Predicated region
    $region14: #{automatic_weighted_loss.1} parent=1 // pred_check
      _
    $region15: #{automatic_weighted_loss.1} parent=1 // pred_check_branch
      %51 = sbr.rel (0) target = $region17
    $region16: #{automatic_weighted_loss.1} parent=1 // pred_region
      %52 = dma.done [#allocation3], 16
    $region17: #{automatic_weighted_loss.1} parent=1 // pred_fallthru
      _
    %53 = sfence
    %54 = vsyncpa [#allocation3], 1

</llo_original>
